<compile_context>
chip_gen: v6e
topology: v6e:2x2x1
jax: 0.10.0
libtpu: 0.0.40
codegen_flags: <defaults>
</compile_context>

<pallas_src>
import functools
import numpy as np

import jax
import jax.numpy as jnp
from jax.experimental import pallas as pl
from jax.experimental.pallas import tpu as pltpu

NUM_QUBITS = 4
NUM_LAYERS = 2
BATCH = 8
DIM = 2 ** NUM_QUBITS
TILE_B = 512          # batch columns per grid step (lane-dense, >=512 for HBM roofline)


# ----------------------------------------------------------------------------
# Parameter setup (glue): build M = U^dag (Z^{⊗n}) U from the circuit weights.
# ----------------------------------------------------------------------------
def _rx(theta):
    c, s = np.cos(theta / 2.0), np.sin(theta / 2.0)
    return np.array([[c, -1j * s], [-1j * s, c]], dtype=np.complex128)


def _kron_all(mats):
    return functools.reduce(np.kron, mats)


def _cnot(n, control, target):
    d = 2 ** n
    idx = np.arange(d)
    cbit = (idx >> (n - 1 - control)) & 1
    new_idx = np.where(cbit == 1, idx ^ (1 << (n - 1 - target)), idx)
    p = np.zeros((d, d), dtype=np.complex128)
    p[new_idx, idx] = 1.0
    return p


def build_observable_matrix(weights):
    """Effective observable M (real symmetric part; the imaginary part is
    antisymmetric and drops out against the real embedded state)."""
    n, num_layers = NUM_QUBITS, NUM_LAYERS
    w = np.asarray(weights, dtype=np.float64)
    d = 2 ** n
    u = np.eye(d, dtype=np.complex128)
    if n == 1:
        ent_pairs = []
    elif n == 2:
        ent_pairs = [(0, 1)]
    else:
        ent_pairs = [(i, (i + 1) % n) for i in range(n)]
    for layer in range(num_layers):
        rot = _kron_all([_rx(w[layer, i]) for i in range(n)])
        u = rot @ u
        for (c, t) in ent_pairs:
            u = _cnot(n, c, t) @ u
    zdiag = np.array([(-1) ** bin(k).count("1") for k in range(d)],
                     dtype=np.complex128)
    m = u.conj().T @ (zdiag[:, None] * u)
    return np.real(m).astype(np.float32)


def build_bits():
    """bits[k, i] = value of wire i's bit in basis index k (wire 0 = MSB)."""
    bits = np.zeros((DIM, NUM_QUBITS), dtype=np.float32)
    for k in range(DIM):
        for i in range(NUM_QUBITS):
            bits[k, i] = (k >> (NUM_QUBITS - 1 - i)) & 1
    return bits


# ----------------------------------------------------------------------------
# Pallas kernel: embed -> statevector -> quadratic form with M.
# Layout (batch on lanes): x (n, TB), bits (D, n), m (D, D), out (1, TB).
# ----------------------------------------------------------------------------
def angle_expval_kernel(x_ref, bits_ref, m_ref, out_ref):
    x = x_ref[...]                            # (n, TB) f32
    n, tb = x.shape
    d = bits_ref.shape[0]

    c = jnp.cos(0.5 * x)                      # (n, TB)  EUP
    s = jnp.sin(0.5 * x)                      # (n, TB)  EUP

    # Product state from the RY angle embedding, built with one vselect per qubit:
    #   psi[k, b] = prod_i ( bit_i(k) ? sin(x[i,b]/2) : cos(x[i,b]/2) )
    # Broadcasts are done explicitly in f32 so the select condition is full-shape.
    psi = None
    for i in range(n):                        # n is small & static -> unrolled
        bit_i = jnp.broadcast_to(bits_ref[:, i:i + 1], (d, tb))   # (D, TB) in {0,1}
        s_i = jnp.broadcast_to(s[i:i + 1, :], (d, tb))            # (D, TB)
        c_i = jnp.broadcast_to(c[i:i + 1, :], (d, tb))            # (D, TB)
        factor = jnp.where(bit_i > 0.5, s_i, c_i)                 # single vselect
        psi = factor if psi is None else psi * factor             # (D, TB)

    # Quadratic form <psi| M |psi>: (D,D)@(D,TB) on the MXU, then a sublane
    # slice-and-add reduction tree into the lane-dense (1, TB) output.
    tmp = jnp.dot(m_ref[...], psi, preferred_element_type=jnp.float32)  # (D, TB)
    r = psi * tmp                                                       # (D, TB)
    rows = d
    while rows > 1:                           # 16 -> 8 -> 4 -> 2 -> 1 (full-vreg adds)
        half = rows // 2
        r = r[:half, :] + r[half:rows, :]
        rows = half
    out_ref[...] = r                          # (1, TB)


def _pallas_expval(x_t, bits, m, tile_b):
    n, b_pad = x_t.shape
    d = m.shape[0]
    grid = (b_pad // tile_b,)
    return pl.pallas_call(
        angle_expval_kernel,
        out_shape=jax.ShapeDtypeStruct((1, b_pad), jnp.float32),
        grid_spec=pltpu.PrefetchScalarGridSpec(
            num_scalar_prefetch=0,
            grid=grid,
            in_specs=[
                pl.BlockSpec((n, tile_b), lambda i: (0, i)),   # x tile (pipelined)
                pl.BlockSpec((d, n), lambda i: (0, 0)),        # bits (grid-invariant)
                pl.BlockSpec((d, d), lambda i: (0, 0)),        # M    (grid-invariant)
            ],
            out_specs=pl.BlockSpec((1, tile_b), lambda i: (0, i)),
        ),
        compiler_params=pltpu.CompilerParams(
            dimension_semantics=("parallel",),                 # 2 TCs on v7x
        ),
    )(x_t, bits, m)


@functools.partial(jax.jit, static_argnames=("tile_b",))
def angle_embedding_classifier(x, bits, m, tile_b=TILE_B):
    """x: (B, n_qubits) angles -> (B,) expectation values (TorchLayer forward)."""
    batch, n = x.shape
    b_pad = pl.cdiv(batch, tile_b) * tile_b
    # Transpose so batch is the lane axis; zero-pad the batch to a tile multiple
    # (padded lanes compute expval of |0..0> through the circuit and are sliced off).
    x_t = jnp.zeros((n, b_pad), jnp.float32).at[:, :batch].set(
        x.T.astype(jnp.float32))
    out = _pallas_expval(x_t, bits, m, tile_b)                 # (1, b_pad)
    return out[0, :batch]


# ----------------------------------------------------------------------------
# Pure numpy reference (statevector math) for a correctness check.
# ----------------------------------------------------------------------------
def reference(x, bits, m):
    x = np.asarray(x, dtype=np.float64)
    c, s = np.cos(x / 2.0), np.sin(x / 2.0)
    psi = np.ones((x.shape[0], DIM), dtype=np.float64)
    for i in range(NUM_QUBITS):
        psi = psi * np.where(bits[None, :, i] == 0.0, c[:, i:i + 1], s[:, i:i + 1])
    return np.einsum("bi,ij,bj->b", psi, np.asarray(m, np.float64), psi)


if __name__ == "__main__":
    key = jax.random.PRNGKey(0)
    k_w, k_x = jax.random.split(key)

    # Deterministic parameter init, matching 0.1 * rand(weights_shape).
    weights = 0.1 * jax.random.uniform(k_w, (NUM_LAYERS, NUM_QUBITS),
                                       dtype=jnp.float32)

    # Example input: (batch, num_qubits) angles.
    x = jax.random.uniform(k_x, (BATCH, NUM_QUBITS), dtype=jnp.float32,
                           minval=0.0, maxval=np.pi)

    m = jnp.asarray(build_observable_matrix(np.asarray(weights)))  # (2^n, 2^n) f32
    bits = jnp.asarray(build_bits())                               # (2^n, n)   f32

    out = angle_embedding_classifier(x, bits, m)
    out = jax.block_until_ready(out)

    ref = reference(np.asarray(x), np.asarray(bits), np.asarray(m))
    assert out.shape == (BATCH,)
    np.testing.assert_allclose(np.asarray(out), ref, rtol=1e-4, atol=1e-5)

    print("KERNEL_OK")
</pallas_src>

<mosaic_0001>
module attributes {stable_mosaic.version = 11 : i64} {
  func.func @angle_expval_kernel(%arg0: i32, %arg1: memref<4x512xf32, #tpu.memory_space<vmem>>, %arg2: memref<16x4xf32, #tpu.memory_space<vmem>>, %arg3: memref<16x16xf32, #tpu.memory_space<vmem>>, %arg4: memref<1x512xf32, #tpu.memory_space<vmem>>) attributes {dimension_semantics = [#tpu.dimension_semantics<parallel>], iteration_bounds = array<i64: 1>, scalar_prefetch = 0 : i64, scratch_operands = 0 : i64, tpu.core_type = #tpu.core_type<tc>, window_params = [{transform_indices = @transform_0, window_bounds = array<i64: 4, 512>}, {pipeline_mode = #tpu.pipeline_mode<synchronous>, transform_indices = @transform_1, window_bounds = array<i64: 16, 4>}, {pipeline_mode = #tpu.pipeline_mode<synchronous>, transform_indices = @transform_2, window_bounds = array<i64: 16, 16>}, {transform_indices = @transform_3, window_bounds = array<i64: 1, 512>}]} {
    %c0 = arith.constant 0 : index
    %c0_0 = arith.constant 0 : index
    %0 = vector.load %arg1[%c0, %c0_0] : memref<4x512xf32, #tpu.memory_space<vmem>>, vector<4x512xf32>
    %cst = arith.constant 5.000000e-01 : f32
    %1 = vector.broadcast %cst : f32 to vector<4x512xf32>
    %2 = arith.mulf %1, %0 : vector<4x512xf32>
    %3 = math.cos %2 : vector<4x512xf32>
    %cst_1 = arith.constant 5.000000e-01 : f32
    %4 = vector.broadcast %cst_1 : f32 to vector<4x512xf32>
    %5 = arith.mulf %4, %0 : vector<4x512xf32>
    %6 = math.sin %5 : vector<4x512xf32>
    %c0_2 = arith.constant 0 : index
    %c0_3 = arith.constant 0 : index
    %7 = vector.load %arg2[%c0_2, %c0_3] : memref<16x4xf32, #tpu.memory_space<vmem>>, vector<16x1xf32>
    %8 = vector.shape_cast %7 : vector<16x1xf32> to vector<16x1xf32>
    %9 = vector.broadcast %8 : vector<16x1xf32> to vector<16x512xf32>
    %10 = vector.extract_strided_slice %6 {offsets = [0, 0], sizes = [1, 512], strides = [1, 1]} : vector<4x512xf32> to vector<1x512xf32>
    %11 = vector.shape_cast %10 : vector<1x512xf32> to vector<1x512xf32>
    %12 = vector.broadcast %11 : vector<1x512xf32> to vector<16x512xf32>
    %13 = vector.extract_strided_slice %3 {offsets = [0, 0], sizes = [1, 512], strides = [1, 1]} : vector<4x512xf32> to vector<1x512xf32>
    %14 = vector.shape_cast %13 : vector<1x512xf32> to vector<1x512xf32>
    %15 = vector.broadcast %14 : vector<1x512xf32> to vector<16x512xf32>
    %cst_4 = arith.constant 5.000000e-01 : f32
    %16 = vector.broadcast %cst_4 : f32 to vector<16x512xf32>
    %17 = arith.cmpf ogt, %9, %16 : vector<16x512xf32>
    %18 = arith.select %17, %12, %15 : vector<16x512xi1>, vector<16x512xf32>
    %c0_5 = arith.constant 0 : index
    %c1 = arith.constant 1 : index
    %19 = vector.load %arg2[%c0_5, %c1] : memref<16x4xf32, #tpu.memory_space<vmem>>, vector<16x1xf32>
    %20 = vector.shape_cast %19 : vector<16x1xf32> to vector<16x1xf32>
    %21 = vector.broadcast %20 : vector<16x1xf32> to vector<16x512xf32>
    %22 = vector.extract_strided_slice %6 {offsets = [1, 0], sizes = [1, 512], strides = [1, 1]} : vector<4x512xf32> to vector<1x512xf32>
    %23 = vector.shape_cast %22 : vector<1x512xf32> to vector<1x512xf32>
    %24 = vector.broadcast %23 : vector<1x512xf32> to vector<16x512xf32>
    %25 = vector.extract_strided_slice %3 {offsets = [1, 0], sizes = [1, 512], strides = [1, 1]} : vector<4x512xf32> to vector<1x512xf32>
    %26 = vector.shape_cast %25 : vector<1x512xf32> to vector<1x512xf32>
    %27 = vector.broadcast %26 : vector<1x512xf32> to vector<16x512xf32>
    %cst_6 = arith.constant 5.000000e-01 : f32
    %28 = vector.broadcast %cst_6 : f32 to vector<16x512xf32>
    %29 = arith.cmpf ogt, %21, %28 : vector<16x512xf32>
    %30 = arith.select %29, %24, %27 : vector<16x512xi1>, vector<16x512xf32>
    %31 = arith.mulf %18, %30 : vector<16x512xf32>
    %c0_7 = arith.constant 0 : index
    %c2 = arith.constant 2 : index
    %32 = vector.load %arg2[%c0_7, %c2] : memref<16x4xf32, #tpu.memory_space<vmem>>, vector<16x1xf32>
    %33 = vector.shape_cast %32 : vector<16x1xf32> to vector<16x1xf32>
    %34 = vector.broadcast %33 : vector<16x1xf32> to vector<16x512xf32>
    %35 = vector.extract_strided_slice %6 {offsets = [2, 0], sizes = [1, 512], strides = [1, 1]} : vector<4x512xf32> to vector<1x512xf32>
    %36 = vector.shape_cast %35 : vector<1x512xf32> to vector<1x512xf32>
    %37 = vector.broadcast %36 : vector<1x512xf32> to vector<16x512xf32>
    %38 = vector.extract_strided_slice %3 {offsets = [2, 0], sizes = [1, 512], strides = [1, 1]} : vector<4x512xf32> to vector<1x512xf32>
    %39 = vector.shape_cast %38 : vector<1x512xf32> to vector<1x512xf32>
    %40 = vector.broadcast %39 : vector<1x512xf32> to vector<16x512xf32>
    %cst_8 = arith.constant 5.000000e-01 : f32
    %41 = vector.broadcast %cst_8 : f32 to vector<16x512xf32>
    %42 = arith.cmpf ogt, %34, %41 : vector<16x512xf32>
    %43 = arith.select %42, %37, %40 : vector<16x512xi1>, vector<16x512xf32>
    %44 = arith.mulf %31, %43 : vector<16x512xf32>
    %c0_9 = arith.constant 0 : index
    %c3 = arith.constant 3 : index
    %45 = vector.load %arg2[%c0_9, %c3] : memref<16x4xf32, #tpu.memory_space<vmem>>, vector<16x1xf32>
    %46 = vector.shape_cast %45 : vector<16x1xf32> to vector<16x1xf32>
    %47 = vector.broadcast %46 : vector<16x1xf32> to vector<16x512xf32>
    %48 = vector.extract_strided_slice %6 {offsets = [3, 0], sizes = [1, 512], strides = [1, 1]} : vector<4x512xf32> to vector<1x512xf32>
    %49 = vector.shape_cast %48 : vector<1x512xf32> to vector<1x512xf32>
    %50 = vector.broadcast %49 : vector<1x512xf32> to vector<16x512xf32>
    %51 = vector.extract_strided_slice %3 {offsets = [3, 0], sizes = [1, 512], strides = [1, 1]} : vector<4x512xf32> to vector<1x512xf32>
    %52 = vector.shape_cast %51 : vector<1x512xf32> to vector<1x512xf32>
    %53 = vector.broadcast %52 : vector<1x512xf32> to vector<16x512xf32>
    %cst_10 = arith.constant 5.000000e-01 : f32
    %54 = vector.broadcast %cst_10 : f32 to vector<16x512xf32>
    %55 = arith.cmpf ogt, %47, %54 : vector<16x512xf32>
    %56 = arith.select %55, %50, %53 : vector<16x512xi1>, vector<16x512xf32>
    %57 = arith.mulf %44, %56 : vector<16x512xf32>
    %c0_11 = arith.constant 0 : index
    %c0_12 = arith.constant 0 : index
    %58 = vector.load %arg3[%c0_11, %c0_12] : memref<16x16xf32, #tpu.memory_space<vmem>>, vector<16x16xf32>
    %cst_13 = arith.constant dense<0.000000e+00> : vector<16x512xf32>
    %59 = tpu.matmul %58, %57, %cst_13 {dimension_numbers = #tpu.dot_dimension_numbers<[1], [0], [0], [1], [0, 0, 1, 1], [], []>} : vector<16x16xf32>, vector<16x512xf32>, vector<16x512xf32> -> vector<16x512xf32>
    %60 = arith.mulf %57, %59 : vector<16x512xf32>
    %61 = vector.extract_strided_slice %60 {offsets = [0, 0], sizes = [8, 512], strides = [1, 1]} : vector<16x512xf32> to vector<8x512xf32>
    %62 = vector.extract_strided_slice %60 {offsets = [8, 0], sizes = [8, 512], strides = [1, 1]} : vector<16x512xf32> to vector<8x512xf32>
    %63 = arith.addf %61, %62 : vector<8x512xf32>
    %64 = vector.extract_strided_slice %63 {offsets = [0, 0], sizes = [4, 512], strides = [1, 1]} : vector<8x512xf32> to vector<4x512xf32>
    %65 = vector.extract_strided_slice %63 {offsets = [4, 0], sizes = [4, 512], strides = [1, 1]} : vector<8x512xf32> to vector<4x512xf32>
    %66 = arith.addf %64, %65 : vector<4x512xf32>
    %67 = vector.extract_strided_slice %66 {offsets = [0, 0], sizes = [2, 512], strides = [1, 1]} : vector<4x512xf32> to vector<2x512xf32>
    %68 = vector.extract_strided_slice %66 {offsets = [2, 0], sizes = [2, 512], strides = [1, 1]} : vector<4x512xf32> to vector<2x512xf32>
    %69 = arith.addf %67, %68 : vector<2x512xf32>
    %70 = vector.extract_strided_slice %69 {offsets = [0, 0], sizes = [1, 512], strides = [1, 1]} : vector<2x512xf32> to vector<1x512xf32>
    %71 = vector.extract_strided_slice %69 {offsets = [1, 0], sizes = [1, 512], strides = [1, 1]} : vector<2x512xf32> to vector<1x512xf32>
    %72 = arith.addf %70, %71 : vector<1x512xf32>
    %c0_14 = arith.constant 0 : index
    %c0_15 = arith.constant 0 : index
    %73 = vector.load %arg4[%c0_14, %c0_15] : memref<1x512xf32, #tpu.memory_space<vmem>>, vector<1x512xf32>
    tpu.vector_store %arg4[%c0_14, %c0_15], %72 {strides = array<i32>} : memref<1x512xf32, #tpu.memory_space<vmem>>, vector<1x512xf32>,
    return
  }
  func.func @transform_0(%arg0: i32) -> (i32, i32) {
    %c0_i32 = arith.constant 0 : i32
    %c0_i32_0 = arith.constant 0 : i32
    return %c0_i32, %arg0 : i32, i32
  }
  func.func @transform_1(%arg0: i32) -> (i32, i32) {
    %c0_i32 = arith.constant 0 : i32
    %c0_i32_0 = arith.constant 0 : i32
    %c0_i32_1 = arith.constant 0 : i32
    return %c0_i32, %c0_i32_0 : i32, i32
  }
  func.func @transform_2(%arg0: i32) -> (i32, i32) {
    %c0_i32 = arith.constant 0 : i32
    %c0_i32_0 = arith.constant 0 : i32
    %c0_i32_1 = arith.constant 0 : i32
    return %c0_i32, %c0_i32_0 : i32, i32
  }
  func.func @transform_3(%arg0: i32) -> (i32, i32) {
    %c0_i32 = arith.constant 0 : i32
    %c0_i32_0 = arith.constant 0 : i32
    return %c0_i32, %arg0 : i32, i32
  }
}

</mosaic_0001>

<llo_original>
// kernel: angle_embedding_classifier.1
$region0: #{angle_embedding_classifier.1}
  #allocation0 [shape = 'u32[]', space=smem, size = 0x4, offset = 0x4, fixed_abs, tag = 'smem constant byte address 0x4 - core index']
  #allocation1 [shape = 'u32[144,128]{1,0:T(1,128)}', space=vmem, size = 0x12000, scoped, tag = 'internal scratch']
  %s0 = inlined_call_operand.vmem [shape: f32[4,512], index: 0, kind: input, shape index: {}]
  %s1 = inlined_call_operand.vmem [shape: f32[16,4], index: 1, kind: input, shape index: {}]
  %s2 = inlined_call_operand.vmem [shape: f32[16,16], index: 2, kind: input, shape index: {}]
  %s3 = inlined_call_operand.vmem [shape: f32[1,512], index: 3, kind: output, shape index: {}]
  %s4 = sld [smem:[#allocation0]]
  $region22: #{angle_embedding_classifier.1} parent=0
    _
  %s6 = ssub.s32 1, %s4
  %s7 = scalar_select 0, %s6, %s4
  // Predicated region
  $region2: #{angle_embedding_classifier.1} parent=0 // pred_check
    _
  $region3: #{angle_embedding_classifier.1} parent=0 // pred_check_branch
    %9 = sbr.rel (0) target = $region5
  $region4: #{angle_embedding_classifier.1} parent=0 // pred_region
    _
  $region5: #{angle_embedding_classifier.1} parent=0 // pred_fallthru
    _
  // Predicated region
  $region6: #{angle_embedding_classifier.1} parent=0 // pred_check
    _
  $region7: #{angle_embedding_classifier.1} parent=0 // pred_check_branch
    %11 = sbr.rel (0) target = $region9
  $region8: #{angle_embedding_classifier.1} parent=0 // pred_region
    _
  $region9: #{angle_embedding_classifier.1} parent=0 // pred_fallthru
    _
  // Predicated region
  $region10: #{angle_embedding_classifier.1} parent=0 // pred_check
    _
  $region11: #{angle_embedding_classifier.1} parent=0 // pred_check_branch
    %13 = sbr.rel (0) target = $region13
  $region12: #{angle_embedding_classifier.1} parent=0 // pred_region
    _
  $region13: #{angle_embedding_classifier.1} parent=0 // pred_fallthru
    _
  %v14 = vld [vmem:[%s0] sm:$0xff]
  %v15 = vld [vmem:[%s0 + $0x8] sm:$0xff]
  %v16 = vmul.f32 %v14, 0.5
  %v17 = vmul.f32 %v15, 0.5
  %v18 = vand.u32 2147483647, %v16
  %vm19 = vcmp.le.f32.partialorder %v18, 0.7853982
  %vm20 = vcmp.lt.s32.totalorder %v16, 0
  %v21 = vand.u32 %v16, 2139095040
  %v22 = vshrl.u32 %v21, 23
  %v23 = vsub.s32 %v22, 127
  %v24 = vand.u32 2147483647, %v16
  %v25 = vand.u32 %v24, 8388607
  %v26 = vor.u32 %v25, 8388608
  %v27 = vsub.s32 0, %v26
  %v28 = vadd.s32 %v23, 1
  %vm29 = vcmp.gt.s32.totalorder %v28, 0
  %v30 = vsel %vm29, %v28, 0
  %v31 = vshrl.u32 %v30, 5
  %v32 = vand.u32 %v30, 31
  %v33 = vsub.s32 32, %v32
  %v34 = vshrl.u32 683565275, %v33
  %v35 = vshll.u32 683565275, %v32
  %v36 = vshrl.u32 2475754826, %v33
  %v37 = vor.u32 %v35, %v36
  %v38 = vshll.u32 2475754826, %v32
  %v39 = vshrl.u32 2131351028, %v33
  %v40 = vor.u32 %v38, %v39
  %v41 = vshll.u32 2131351028, %v32
  %v42 = vshrl.u32 2102212464, %v33
  %v43 = vor.u32 %v41, %v42
  %v44 = vshll.u32 2102212464, %v32
  %v45 = vshrl.u32 920167782, %v33
  %v46 = vor.u32 %v44, %v45
  %v47 = vshll.u32 920167782, %v32
  %v48 = vshrl.u32 1326507024, %v33
  %v49 = vor.u32 %v47, %v48
  %vm50 = vcmp.lt.s32.totalorder %v31, 1
  %vm51 = vcmp.lt.s32.totalorder %v31, 2
  %vm52 = vcmp.lt.s32.totalorder %v31, 3
  %vm53 = vcmp.lt.s32.totalorder %v31, 4
  %v54 = vsel %vm50, %v34, %v37
  %v55 = vsel %vm53, %v43, 2102212464
  %v56 = vsel %vm52, %v40, %v55
  %v57 = vsel %vm51, %v54, %v56
  %v58 = vsel %vm50, %v37, %v40
  %v59 = vsel %vm53, %v46, 920167782
  %v60 = vsel %vm52, %v43, %v59
  %v61 = vsel %vm51, %v58, %v60
  %v62 = vsel %vm50, %v40, %v43
  %v63 = vsel %vm53, %v49, 1326507024
  %v64 = vsel %vm52, %v46, %v63
  %v65 = vsel %vm51, %v62, %v64
  %v66 = vshll.u32 %v26, 8
  %v67 = vmul.u32.u64.compose %v66, %v65
  %v68 = vextract.low.u32 %v67
  %v69 = vextract.high.u32 %v67
  %v70 = vmul.u32.u64.compose %v66, %v61
  %v71 = vextract.low.u32 %v70
  %v72 = vextract.high.u32 %v70
  %v73 = vmul.u32 %v66, %v57
  %v74 = vadd.s32 %v69, %v71
  %vm75 = vc.u32 %v69, %v71
  %v76 = vadd.s32 %v72, 1
  %v77 = vsel %vm75, %v76, %v72
  %v78 = vadd.s32 %v73, %v77
  %v79 = vadd.s32 %v78, 536870912
  %v80 = vshrl.u32 %v79, 30
  %v81 = vshll.u32 %v80, 30
  %v82 = vsub.s32 %v78, %v81
  %vm83 = vcmp.lt.s32.totalorder %v82, 0
  %v84 = vsub.s32 0, %v82
  %v85 = vsel %vm83, %v84, %v82
  %v86 = vclz %v85
  %v87 = vsub.s32 %v86, 2
  %vm88 = vcmp.gt.s32.totalorder 0, %v87
  %v89 = vsel %vm88, 0, %v87
  %v90 = vsub.s32 32, %v89
  %v91 = vshll.u32 %v82, %v89
  %v92 = vshrl.u32 %v74, %v90
  %v93 = vor.u32 %v91, %v92
  %v94 = vsub.s32 4294967266, %v89
  %v95 = vadd.s32 %v94, 127
  %v96 = vshll.u32 %v95, 23
  %v97 = vor.u32 4788187, %v96
  %v98 = vand.u32 2147483647, %v97
  %v100 = vcvt.s32.f32 %v93
  %v101 = vmul.f32 %v100, %v98
  %v102 = vxor.u32 %v101, 2147483648
  %v103 = vsel %vm20, %v102, %v101
  %v104 = vsub.s32 4, %v80
  %v105 = vsel %vm20, %v104, %v80
  %v106 = vsel %vm19, %v16, %v103
  %v107 = vsel %vm19, 0, %v105
  %v108 = vcosq.f32.pop %v106
  %v109 = vsinq.f32.pop %v106
  %vm110 = vweird.f32 %v16
  %v111 = vand.u32 %v107, 3
  %vm112 = vcmp.lt.s32.totalorder %v111, 2
  %vm113 = vcmp.eq.s32.totalorder %v111, 0
  %v114 = vxor.u32 %v109, 2147483648
  %v115 = vsel %vm113, %v108, %v114
  %vm116 = vcmp.eq.s32.totalorder %v111, 2
  %v117 = vxor.u32 %v108, 2147483648
  %v118 = vsel %vm116, %v117, %v109
  %v119 = vsel %vm112, %v115, %v118
  %v120 = vsel %vm110, nan, %v119
  %v121 = vand.u32 2147483647, %v17
  %vm122 = vcmp.le.f32.partialorder %v121, 0.7853982
  %vm123 = vcmp.lt.s32.totalorder %v17, 0
  %v124 = vand.u32 %v17, 2139095040
  %v125 = vshrl.u32 %v124, 23
  %v126 = vsub.s32 %v125, 127
  %v127 = vand.u32 2147483647, %v17
  %v128 = vand.u32 %v127, 8388607
  %v129 = vor.u32 %v128, 8388608
  %v130 = vsub.s32 0, %v129
  %v131 = vadd.s32 %v126, 1
  %vm132 = vcmp.gt.s32.totalorder %v131, 0
  %v133 = vsel %vm132, %v131, 0
  %v134 = vshrl.u32 %v133, 5
  %v135 = vand.u32 %v133, 31
  %v136 = vsub.s32 32, %v135
  %v137 = vshrl.u32 683565275, %v136
  %v138 = vshll.u32 683565275, %v135
  %v139 = vshrl.u32 2475754826, %v136
  %v140 = vor.u32 %v138, %v139
  %v141 = vshll.u32 2475754826, %v135
  %v142 = vshrl.u32 2131351028, %v136
  %v143 = vor.u32 %v141, %v142
  %v144 = vshll.u32 2131351028, %v135
  %v145 = vshrl.u32 2102212464, %v136
  %v146 = vor.u32 %v144, %v145
  %v147 = vshll.u32 2102212464, %v135
  %v148 = vshrl.u32 920167782, %v136
  %v149 = vor.u32 %v147, %v148
  %v150 = vshll.u32 920167782, %v135
  %v151 = vshrl.u32 1326507024, %v136
  %v152 = vor.u32 %v150, %v151
  %vm153 = vcmp.lt.s32.totalorder %v134, 1
  %vm154 = vcmp.lt.s32.totalorder %v134, 2
  %vm155 = vcmp.lt.s32.totalorder %v134, 3
  %vm156 = vcmp.lt.s32.totalorder %v134, 4
  %v157 = vsel %vm153, %v137, %v140
  %v158 = vsel %vm156, %v146, 2102212464
  %v159 = vsel %vm155, %v143, %v158
  %v160 = vsel %vm154, %v157, %v159
  %v161 = vsel %vm153, %v140, %v143
  %v162 = vsel %vm156, %v149, 920167782
  %v163 = vsel %vm155, %v146, %v162
  %v164 = vsel %vm154, %v161, %v163
  %v165 = vsel %vm153, %v143, %v146
  %v166 = vsel %vm156, %v152, 1326507024
  %v167 = vsel %vm155, %v149, %v166
  %v168 = vsel %vm154, %v165, %v167
  %v169 = vshll.u32 %v129, 8
  %v170 = vmul.u32.u64.compose %v169, %v168
  %v171 = vextract.low.u32 %v170
  %v172 = vextract.high.u32 %v170
  %v173 = vmul.u32.u64.compose %v169, %v164
  %v174 = vextract.low.u32 %v173
  %v175 = vextract.high.u32 %v173
  %v176 = vmul.u32 %v169, %v160
  %v177 = vadd.s32 %v172, %v174
  %vm178 = vc.u32 %v172, %v174
  %v179 = vadd.s32 %v175, 1
  %v180 = vsel %vm178, %v179, %v175
  %v181 = vadd.s32 %v176, %v180
  %v182 = vadd.s32 %v181, 536870912
  %v183 = vshrl.u32 %v182, 30
  %v184 = vshll.u32 %v183, 30
  %v185 = vsub.s32 %v181, %v184
  %vm186 = vcmp.lt.s32.totalorder %v185, 0
  %v187 = vsub.s32 0, %v185
  %v188 = vsel %vm186, %v187, %v185
  %v189 = vclz %v188
  %v190 = vsub.s32 %v189, 2
  %vm191 = vcmp.gt.s32.totalorder 0, %v190
  %v192 = vsel %vm191, 0, %v190
  %v193 = vsub.s32 32, %v192
  %v194 = vshll.u32 %v185, %v192
  %v195 = vshrl.u32 %v177, %v193
  %v196 = vor.u32 %v194, %v195
  %v197 = vsub.s32 4294967266, %v192
  %v198 = vadd.s32 %v197, 127
  %v199 = vshll.u32 %v198, 23
  %v200 = vor.u32 4788187, %v199
  %v201 = vand.u32 2147483647, %v200
  %v203 = vcvt.s32.f32 %v196
  %v204 = vmul.f32 %v203, %v201
  %v205 = vxor.u32 %v204, 2147483648
  %v206 = vsel %vm123, %v205, %v204
  %v207 = vsub.s32 4, %v183
  %v208 = vsel %vm123, %v207, %v183
  %v209 = vsel %vm122, %v17, %v206
  %v210 = vsel %vm122, 0, %v208
  %v211 = vcosq.f32.pop %v209
  %v212 = vsinq.f32.pop %v209
  %vm213 = vweird.f32 %v17
  %v214 = vand.u32 %v210, 3
  %vm215 = vcmp.lt.s32.totalorder %v214, 2
  %vm216 = vcmp.eq.s32.totalorder %v214, 0
  %v217 = vxor.u32 %v212, 2147483648
  %v218 = vsel %vm216, %v211, %v217
  %vm219 = vcmp.eq.s32.totalorder %v214, 2
  %v220 = vxor.u32 %v211, 2147483648
  %v221 = vsel %vm219, %v220, %v212
  %v222 = vsel %vm215, %v218, %v221
  %v223 = vsel %vm213, nan, %v222
  %v224 = vand.u32 2147483647, %v16
  %vm225 = vcmp.le.f32.partialorder %v224, 0.7853982
  %vm226 = vcmp.lt.s32.totalorder %v16, 0
  %v227 = vand.u32 %v16, 2139095040
  %v228 = vshrl.u32 %v227, 23
  %v229 = vsub.s32 %v228, 127
  %v230 = vand.u32 2147483647, %v16
  %v231 = vand.u32 %v230, 8388607
  %v232 = vor.u32 %v231, 8388608
  %v233 = vsub.s32 0, %v232
  %v234 = vadd.s32 %v229, 1
  %vm235 = vcmp.gt.s32.totalorder %v234, 0
  %v236 = vsel %vm235, %v234, 0
  %v237 = vshrl.u32 %v236, 5
  %v238 = vand.u32 %v236, 31
  %v239 = vsub.s32 32, %v238
  %v240 = vshrl.u32 683565275, %v239
  %v241 = vshll.u32 683565275, %v238
  %v242 = vshrl.u32 2475754826, %v239
  %v243 = vor.u32 %v241, %v242
  %v244 = vshll.u32 2475754826, %v238
  %v245 = vshrl.u32 2131351028, %v239
  %v246 = vor.u32 %v244, %v245
  %v247 = vshll.u32 2131351028, %v238
  %v248 = vshrl.u32 2102212464, %v239
  %v249 = vor.u32 %v247, %v248
  %v250 = vshll.u32 2102212464, %v238
  %v251 = vshrl.u32 920167782, %v239
  %v252 = vor.u32 %v250, %v251
  %v253 = vshll.u32 920167782, %v238
  %v254 = vshrl.u32 1326507024, %v239
  %v255 = vor.u32 %v253, %v254
  %vm256 = vcmp.lt.s32.totalorder %v237, 1
  %vm257 = vcmp.lt.s32.totalorder %v237, 2
  %vm258 = vcmp.lt.s32.totalorder %v237, 3
  %vm259 = vcmp.lt.s32.totalorder %v237, 4
  %v260 = vsel %vm256, %v240, %v243
  %v261 = vsel %vm259, %v249, 2102212464
  %v262 = vsel %vm258, %v246, %v261
  %v263 = vsel %vm257, %v260, %v262
  %v264 = vsel %vm256, %v243, %v246
  %v265 = vsel %vm259, %v252, 920167782
  %v266 = vsel %vm258, %v249, %v265
  %v267 = vsel %vm257, %v264, %v266
  %v268 = vsel %vm256, %v246, %v249
  %v269 = vsel %vm259, %v255, 1326507024
  %v270 = vsel %vm258, %v252, %v269
  %v271 = vsel %vm257, %v268, %v270
  %v272 = vshll.u32 %v232, 8
  %v273 = vmul.u32.u64.compose %v272, %v271
  %v274 = vextract.low.u32 %v273
  %v275 = vextract.high.u32 %v273
  %v276 = vmul.u32.u64.compose %v272, %v267
  %v277 = vextract.low.u32 %v276
  %v278 = vextract.high.u32 %v276
  %v279 = vmul.u32 %v272, %v263
  %v280 = vadd.s32 %v275, %v277
  %vm281 = vc.u32 %v275, %v277
  %v282 = vadd.s32 %v278, 1
  %v283 = vsel %vm281, %v282, %v278
  %v284 = vadd.s32 %v279, %v283
  %v285 = vadd.s32 %v284, 536870912
  %v286 = vshrl.u32 %v285, 30
  %v287 = vshll.u32 %v286, 30
  %v288 = vsub.s32 %v284, %v287
  %vm289 = vcmp.lt.s32.totalorder %v288, 0
  %v290 = vsub.s32 0, %v288
  %v291 = vsel %vm289, %v290, %v288
  %v292 = vclz %v291
  %v293 = vsub.s32 %v292, 2
  %vm294 = vcmp.gt.s32.totalorder 0, %v293
  %v295 = vsel %vm294, 0, %v293
  %v296 = vsub.s32 32, %v295
  %v297 = vshll.u32 %v288, %v295
  %v298 = vshrl.u32 %v280, %v296
  %v299 = vor.u32 %v297, %v298
  %v300 = vsub.s32 4294967266, %v295
  %v301 = vadd.s32 %v300, 127
  %v302 = vshll.u32 %v301, 23
  %v303 = vor.u32 4788187, %v302
  %v304 = vand.u32 2147483647, %v303
  %v306 = vcvt.s32.f32 %v299
  %v307 = vmul.f32 %v306, %v304
  %v308 = vxor.u32 %v307, 2147483648
  %v309 = vsel %vm226, %v308, %v307
  %v310 = vsub.s32 4, %v286
  %v311 = vsel %vm226, %v310, %v286
  %v312 = vsel %vm225, %v16, %v309
  %v313 = vsel %vm225, 0, %v311
  %v314 = vcosq.f32.pop %v312
  %v315 = vsinq.f32.pop %v312
  %vm316 = vweird.f32 %v16
  %v317 = vadd.s32 %v313, 3
  %v318 = vand.u32 %v317, 3
  %vm319 = vcmp.lt.s32.totalorder %v318, 2
  %vm320 = vcmp.eq.s32.totalorder %v318, 0
  %v321 = vxor.u32 %v315, 2147483648
  %v322 = vsel %vm320, %v314, %v321
  %vm323 = vcmp.eq.s32.totalorder %v318, 2
  %v324 = vxor.u32 %v314, 2147483648
  %v325 = vsel %vm323, %v324, %v315
  %v326 = vsel %vm319, %v322, %v325
  %v327 = vsel %vm316, nan, %v326
  %v328 = vand.u32 2147483647, %v17
  %vm329 = vcmp.le.f32.partialorder %v328, 0.7853982
  %vm330 = vcmp.lt.s32.totalorder %v17, 0
  %v331 = vand.u32 %v17, 2139095040
  %v332 = vshrl.u32 %v331, 23
  %v333 = vsub.s32 %v332, 127
  %v334 = vand.u32 2147483647, %v17
  %v335 = vand.u32 %v334, 8388607
  %v336 = vor.u32 %v335, 8388608
  %v337 = vsub.s32 0, %v336
  %v338 = vadd.s32 %v333, 1
  %vm339 = vcmp.gt.s32.totalorder %v338, 0
  %v340 = vsel %vm339, %v338, 0
  %v341 = vshrl.u32 %v340, 5
  %v342 = vand.u32 %v340, 31
  %v343 = vsub.s32 32, %v342
  %v344 = vshrl.u32 683565275, %v343
  %v345 = vshll.u32 683565275, %v342
  %v346 = vshrl.u32 2475754826, %v343
  %v347 = vor.u32 %v345, %v346
  %v348 = vshll.u32 2475754826, %v342
  %v349 = vshrl.u32 2131351028, %v343
  %v350 = vor.u32 %v348, %v349
  %v351 = vshll.u32 2131351028, %v342
  %v352 = vshrl.u32 2102212464, %v343
  %v353 = vor.u32 %v351, %v352
  %v354 = vshll.u32 2102212464, %v342
  %v355 = vshrl.u32 920167782, %v343
  %v356 = vor.u32 %v354, %v355
  %v357 = vshll.u32 920167782, %v342
  %v358 = vshrl.u32 1326507024, %v343
  %v359 = vor.u32 %v357, %v358
  %vm360 = vcmp.lt.s32.totalorder %v341, 1
  %vm361 = vcmp.lt.s32.totalorder %v341, 2
  %vm362 = vcmp.lt.s32.totalorder %v341, 3
  %vm363 = vcmp.lt.s32.totalorder %v341, 4
  %v364 = vsel %vm360, %v344, %v347
  %v365 = vsel %vm363, %v353, 2102212464
  %v366 = vsel %vm362, %v350, %v365
  %v367 = vsel %vm361, %v364, %v366
  %v368 = vsel %vm360, %v347, %v350
  %v369 = vsel %vm363, %v356, 920167782
  %v370 = vsel %vm362, %v353, %v369
  %v371 = vsel %vm361, %v368, %v370
  %v372 = vsel %vm360, %v350, %v353
  %v373 = vsel %vm363, %v359, 1326507024
  %v374 = vsel %vm362, %v356, %v373
  %v375 = vsel %vm361, %v372, %v374
  %v376 = vshll.u32 %v336, 8
  %v377 = vmul.u32.u64.compose %v376, %v375
  %v378 = vextract.low.u32 %v377
  %v379 = vextract.high.u32 %v377
  %v380 = vmul.u32.u64.compose %v376, %v371
  %v381 = vextract.low.u32 %v380
  %v382 = vextract.high.u32 %v380
  %v383 = vmul.u32 %v376, %v367
  %v384 = vadd.s32 %v379, %v381
  %vm385 = vc.u32 %v379, %v381
  %v386 = vadd.s32 %v382, 1
  %v387 = vsel %vm385, %v386, %v382
  %v388 = vadd.s32 %v383, %v387
  %v389 = vadd.s32 %v388, 536870912
  %v390 = vshrl.u32 %v389, 30
  %v391 = vshll.u32 %v390, 30
  %v392 = vsub.s32 %v388, %v391
  %vm393 = vcmp.lt.s32.totalorder %v392, 0
  %v394 = vsub.s32 0, %v392
  %v395 = vsel %vm393, %v394, %v392
  %v396 = vclz %v395
  %v397 = vsub.s32 %v396, 2
  %vm398 = vcmp.gt.s32.totalorder 0, %v397
  %v399 = vsel %vm398, 0, %v397
  %v400 = vsub.s32 32, %v399
  %v401 = vshll.u32 %v392, %v399
  %v402 = vshrl.u32 %v384, %v400
  %v403 = vor.u32 %v401, %v402
  %v404 = vsub.s32 4294967266, %v399
  %v405 = vadd.s32 %v404, 127
  %v406 = vshll.u32 %v405, 23
  %v407 = vor.u32 4788187, %v406
  %v408 = vand.u32 2147483647, %v407
  %v410 = vcvt.s32.f32 %v403
  %v411 = vmul.f32 %v410, %v408
  %v412 = vxor.u32 %v411, 2147483648
  %v413 = vsel %vm330, %v412, %v411
  %v414 = vsub.s32 4, %v390
  %v415 = vsel %vm330, %v414, %v390
  %v416 = vsel %vm329, %v17, %v413
  %v417 = vsel %vm329, 0, %v415
  %v418 = vcosq.f32.pop %v416
  %v419 = vsinq.f32.pop %v416
  %vm420 = vweird.f32 %v17
  %v421 = vadd.s32 %v417, 3
  %v422 = vand.u32 %v421, 3
  %vm423 = vcmp.lt.s32.totalorder %v422, 2
  %vm424 = vcmp.eq.s32.totalorder %v422, 0
  %v425 = vxor.u32 %v419, 2147483648
  %v426 = vsel %vm424, %v418, %v425
  %vm427 = vcmp.eq.s32.totalorder %v422, 2
  %v428 = vxor.u32 %v418, 2147483648
  %v429 = vsel %vm427, %v428, %v419
  %v430 = vsel %vm423, %v426, %v429
  %v431 = vsel %vm420, nan, %v430
  %v432 = vld [vmem:[%s1] sm:$0xff]
  %v433 = vld [vmem:[%s1 + $0x8] sm:$0xff]
  %435 = vset.pattern.permute.xlu0 0
  %436 = vperm.xlu0 %435, %v432
  %v437 = vpop.permute.xlu0 %436
  %440 = vset.pattern.permute.xlu0 0
  %441 = vperm.xlu0 %440, %v433
  %v442 = vpop.permute.xlu0 %441
  %v446 = vlaneseq
  %v447 = vshrl.u32 %v446, 7
  %v448 = vsub.s32 0, %v447
  %v449 = vrot.slane %v327, %v448
  %v450 = vlaneseq
  %v451 = vshrl.u32 %v450, 7
  %v452 = vsub.s32 4, %v451
  %v453 = vrot.slane %v327, %v452
  %v454 = vlaneseq
  %v455 = vshrl.u32 %v454, 7
  %v456 = vsub.s32 0, %v455
  %v457 = vrot.slane %v431, %v456
  %v458 = vlaneseq
  %v459 = vshrl.u32 %v458, 7
  %v460 = vsub.s32 4, %v459
  %v461 = vrot.slane %v431, %v460
  %v466 = vlaneseq
  %v467 = vshrl.u32 %v466, 7
  %v468 = vsub.s32 0, %v467
  %v469 = vrot.slane %v449, %v468
  %v470 = vlaneseq
  %v471 = vshrl.u32 %v470, 7
  %v472 = vsub.s32 0, %v471
  %v473 = vrot.slane %v453, %v472
  %v474 = vlaneseq
  %v475 = vshrl.u32 %v474, 7
  %v476 = vsub.s32 0, %v475
  %v477 = vrot.slane %v457, %v476
  %v478 = vlaneseq
  %v479 = vshrl.u32 %v478, 7
  %v480 = vsub.s32 0, %v479
  %v481 = vrot.slane %v461, %v480
  %v484 = vlaneseq
  %v485 = vshrl.u32 %v484, 7
  %v486 = vsub.s32 0, %v485
  %v487 = vrot.slane %v120, %v486
  %v488 = vlaneseq
  %v489 = vshrl.u32 %v488, 7
  %v490 = vsub.s32 4, %v489
  %v491 = vrot.slane %v120, %v490
  %v492 = vlaneseq
  %v493 = vshrl.u32 %v492, 7
  %v494 = vsub.s32 0, %v493
  %v495 = vrot.slane %v223, %v494
  %v496 = vlaneseq
  %v497 = vshrl.u32 %v496, 7
  %v498 = vsub.s32 4, %v497
  %v499 = vrot.slane %v223, %v498
  %v504 = vlaneseq
  %v505 = vshrl.u32 %v504, 7
  %v506 = vsub.s32 0, %v505
  %v507 = vrot.slane %v487, %v506
  %v508 = vlaneseq
  %v509 = vshrl.u32 %v508, 7
  %v510 = vsub.s32 0, %v509
  %v511 = vrot.slane %v491, %v510
  %v512 = vlaneseq
  %v513 = vshrl.u32 %v512, 7
  %v514 = vsub.s32 0, %v513
  %v515 = vrot.slane %v495, %v514
  %v516 = vlaneseq
  %v517 = vshrl.u32 %v516, 7
  %v518 = vsub.s32 0, %v517
  %v519 = vrot.slane %v499, %v518
  %vm520 = vcmp.gt.f32.partialorder %v437, 0.5
  %vm521 = vcmp.gt.f32.partialorder %v442, 0.5
  %v522 = vsel %vm520, %v469, %v507
  %v523 = vsel %vm520, %v473, %v511
  %v524 = vsel %vm520, %v477, %v515
  %v525 = vsel %vm520, %v481, %v519
  %v526 = vsel %vm521, %v469, %v507
  %v527 = vsel %vm521, %v473, %v511
  %v528 = vsel %vm521, %v477, %v515
  %v529 = vsel %vm521, %v481, %v519
  %530 = vset.pattern.permute.xlu0 1
  %531 = vperm.xlu0 %530, %v432
  %v532 = vpop.permute.xlu0 %531
  %534 = vset.pattern.permute.xlu0 1
  %535 = vperm.xlu0 %534, %v433
  %v536 = vpop.permute.xlu0 %535
  %v538 = vlaneseq
  %v539 = vshrl.u32 %v538, 7
  %v540 = vsub.s32 1, %v539
  %v541 = vrot.slane %v327, %v540
  %v542 = vlaneseq
  %v543 = vshrl.u32 %v542, 7
  %v544 = vsub.s32 5, %v543
  %v545 = vrot.slane %v327, %v544
  %v546 = vlaneseq
  %v547 = vshrl.u32 %v546, 7
  %v548 = vsub.s32 1, %v547
  %v549 = vrot.slane %v431, %v548
  %v550 = vlaneseq
  %v551 = vshrl.u32 %v550, 7
  %v552 = vsub.s32 5, %v551
  %v553 = vrot.slane %v431, %v552
  %v558 = vlaneseq
  %v559 = vshrl.u32 %v558, 7
  %v560 = vsub.s32 1, %v559
  %v561 = vrot.slane %v541, %v560
  %v562 = vlaneseq
  %v563 = vshrl.u32 %v562, 7
  %v564 = vsub.s32 1, %v563
  %v565 = vrot.slane %v545, %v564
  %v566 = vlaneseq
  %v567 = vshrl.u32 %v566, 7
  %v568 = vsub.s32 1, %v567
  %v569 = vrot.slane %v549, %v568
  %v570 = vlaneseq
  %v571 = vshrl.u32 %v570, 7
  %v572 = vsub.s32 1, %v571
  %v573 = vrot.slane %v553, %v572
  %v574 = vlaneseq
  %v575 = vshrl.u32 %v574, 7
  %v576 = vsub.s32 1, %v575
  %v577 = vrot.slane %v120, %v576
  %v578 = vlaneseq
  %v579 = vshrl.u32 %v578, 7
  %v580 = vsub.s32 5, %v579
  %v581 = vrot.slane %v120, %v580
  %v582 = vlaneseq
  %v583 = vshrl.u32 %v582, 7
  %v584 = vsub.s32 1, %v583
  %v585 = vrot.slane %v223, %v584
  %v586 = vlaneseq
  %v587 = vshrl.u32 %v586, 7
  %v588 = vsub.s32 5, %v587
  %v589 = vrot.slane %v223, %v588
  %v594 = vlaneseq
  %v595 = vshrl.u32 %v594, 7
  %v596 = vsub.s32 1, %v595
  %v597 = vrot.slane %v577, %v596
  %v598 = vlaneseq
  %v599 = vshrl.u32 %v598, 7
  %v600 = vsub.s32 1, %v599
  %v601 = vrot.slane %v581, %v600
  %v602 = vlaneseq
  %v603 = vshrl.u32 %v602, 7
  %v604 = vsub.s32 1, %v603
  %v605 = vrot.slane %v585, %v604
  %v606 = vlaneseq
  %v607 = vshrl.u32 %v606, 7
  %v608 = vsub.s32 1, %v607
  %v609 = vrot.slane %v589, %v608
  %vm610 = vcmp.gt.f32.partialorder %v532, 0.5
  %vm611 = vcmp.gt.f32.partialorder %v536, 0.5
  %v612 = vsel %vm610, %v561, %v597
  %v613 = vsel %vm610, %v565, %v601
  %v614 = vsel %vm610, %v569, %v605
  %v615 = vsel %vm610, %v573, %v609
  %v616 = vsel %vm611, %v561, %v597
  %v617 = vsel %vm611, %v565, %v601
  %v618 = vsel %vm611, %v569, %v605
  %v619 = vsel %vm611, %v573, %v609
  %v620 = vmul.f32 %v522, %v612
  %v621 = vmul.f32 %v523, %v613
  %v622 = vmul.f32 %v524, %v614
  %v623 = vmul.f32 %v525, %v615
  %v624 = vmul.f32 %v526, %v616
  %v625 = vmul.f32 %v527, %v617
  %v626 = vmul.f32 %v528, %v618
  %v627 = vmul.f32 %v529, %v619
  %628 = vset.pattern.permute.xlu0 2
  %629 = vperm.xlu0 %628, %v432
  %v630 = vpop.permute.xlu0 %629
  %632 = vset.pattern.permute.xlu0 2
  %633 = vperm.xlu0 %632, %v433
  %v634 = vpop.permute.xlu0 %633
  %v636 = vlaneseq
  %v637 = vshrl.u32 %v636, 7
  %v638 = vsub.s32 2, %v637
  %v639 = vrot.slane %v327, %v638
  %v640 = vlaneseq
  %v641 = vshrl.u32 %v640, 7
  %v642 = vsub.s32 6, %v641
  %v643 = vrot.slane %v327, %v642
  %v644 = vlaneseq
  %v645 = vshrl.u32 %v644, 7
  %v646 = vsub.s32 2, %v645
  %v647 = vrot.slane %v431, %v646
  %v648 = vlaneseq
  %v649 = vshrl.u32 %v648, 7
  %v650 = vsub.s32 6, %v649
  %v651 = vrot.slane %v431, %v650
  %v656 = vlaneseq
  %v657 = vshrl.u32 %v656, 7
  %v658 = vsub.s32 2, %v657
  %v659 = vrot.slane %v639, %v658
  %v660 = vlaneseq
  %v661 = vshrl.u32 %v660, 7
  %v662 = vsub.s32 2, %v661
  %v663 = vrot.slane %v643, %v662
  %v664 = vlaneseq
  %v665 = vshrl.u32 %v664, 7
  %v666 = vsub.s32 2, %v665
  %v667 = vrot.slane %v647, %v666
  %v668 = vlaneseq
  %v669 = vshrl.u32 %v668, 7
  %v670 = vsub.s32 2, %v669
  %v671 = vrot.slane %v651, %v670
  %v672 = vlaneseq
  %v673 = vshrl.u32 %v672, 7
  %v674 = vsub.s32 2, %v673
  %v675 = vrot.slane %v120, %v674
  %v676 = vlaneseq
  %v677 = vshrl.u32 %v676, 7
  %v678 = vsub.s32 6, %v677
  %v679 = vrot.slane %v120, %v678
  %v680 = vlaneseq
  %v681 = vshrl.u32 %v680, 7
  %v682 = vsub.s32 2, %v681
  %v683 = vrot.slane %v223, %v682
  %v684 = vlaneseq
  %v685 = vshrl.u32 %v684, 7
  %v686 = vsub.s32 6, %v685
  %v687 = vrot.slane %v223, %v686
  %v692 = vlaneseq
  %v693 = vshrl.u32 %v692, 7
  %v694 = vsub.s32 2, %v693
  %v695 = vrot.slane %v675, %v694
  %v696 = vlaneseq
  %v697 = vshrl.u32 %v696, 7
  %v698 = vsub.s32 2, %v697
  %v699 = vrot.slane %v679, %v698
  %v700 = vlaneseq
  %v701 = vshrl.u32 %v700, 7
  %v702 = vsub.s32 2, %v701
  %v703 = vrot.slane %v683, %v702
  %v704 = vlaneseq
  %v705 = vshrl.u32 %v704, 7
  %v706 = vsub.s32 2, %v705
  %v707 = vrot.slane %v687, %v706
  %vm708 = vcmp.gt.f32.partialorder %v630, 0.5
  %vm709 = vcmp.gt.f32.partialorder %v634, 0.5
  %v710 = vsel %vm708, %v659, %v695
  %v711 = vsel %vm708, %v663, %v699
  %v712 = vsel %vm708, %v667, %v703
  %v713 = vsel %vm708, %v671, %v707
  %v714 = vsel %vm709, %v659, %v695
  %v715 = vsel %vm709, %v663, %v699
  %v716 = vsel %vm709, %v667, %v703
  %v717 = vsel %vm709, %v671, %v707
  %v718 = vmul.f32 %v620, %v710
  %v719 = vmul.f32 %v621, %v711
  %v720 = vmul.f32 %v622, %v712
  %v721 = vmul.f32 %v623, %v713
  %v722 = vmul.f32 %v624, %v714
  %v723 = vmul.f32 %v625, %v715
  %v724 = vmul.f32 %v626, %v716
  %v725 = vmul.f32 %v627, %v717
  %726 = vset.pattern.permute.xlu0 3
  %727 = vperm.xlu0 %726, %v432
  %v728 = vpop.permute.xlu0 %727
  %730 = vset.pattern.permute.xlu0 3
  %731 = vperm.xlu0 %730, %v433
  %v732 = vpop.permute.xlu0 %731
  %v734 = vlaneseq
  %v735 = vshrl.u32 %v734, 7
  %v736 = vsub.s32 3, %v735
  %v737 = vrot.slane %v327, %v736
  %v738 = vlaneseq
  %v739 = vshrl.u32 %v738, 7
  %v740 = vsub.s32 7, %v739
  %v741 = vrot.slane %v327, %v740
  %v742 = vlaneseq
  %v743 = vshrl.u32 %v742, 7
  %v744 = vsub.s32 3, %v743
  %v745 = vrot.slane %v431, %v744
  %v746 = vlaneseq
  %v747 = vshrl.u32 %v746, 7
  %v748 = vsub.s32 7, %v747
  %v749 = vrot.slane %v431, %v748
  %v754 = vlaneseq
  %v755 = vshrl.u32 %v754, 7
  %v756 = vsub.s32 3, %v755
  %v757 = vrot.slane %v737, %v756
  %v758 = vlaneseq
  %v759 = vshrl.u32 %v758, 7
  %v760 = vsub.s32 3, %v759
  %v761 = vrot.slane %v741, %v760
  %v762 = vlaneseq
  %v763 = vshrl.u32 %v762, 7
  %v764 = vsub.s32 3, %v763
  %v765 = vrot.slane %v745, %v764
  %v766 = vlaneseq
  %v767 = vshrl.u32 %v766, 7
  %v768 = vsub.s32 3, %v767
  %v769 = vrot.slane %v749, %v768
  %v770 = vlaneseq
  %v771 = vshrl.u32 %v770, 7
  %v772 = vsub.s32 3, %v771
  %v773 = vrot.slane %v120, %v772
  %v774 = vlaneseq
  %v775 = vshrl.u32 %v774, 7
  %v776 = vsub.s32 7, %v775
  %v777 = vrot.slane %v120, %v776
  %v778 = vlaneseq
  %v779 = vshrl.u32 %v778, 7
  %v780 = vsub.s32 3, %v779
  %v781 = vrot.slane %v223, %v780
  %v782 = vlaneseq
  %v783 = vshrl.u32 %v782, 7
  %v784 = vsub.s32 7, %v783
  %v785 = vrot.slane %v223, %v784
  %v790 = vlaneseq
  %v791 = vshrl.u32 %v790, 7
  %v792 = vsub.s32 3, %v791
  %v793 = vrot.slane %v773, %v792
  %v794 = vlaneseq
  %v795 = vshrl.u32 %v794, 7
  %v796 = vsub.s32 3, %v795
  %v797 = vrot.slane %v777, %v796
  %v798 = vlaneseq
  %v799 = vshrl.u32 %v798, 7
  %v800 = vsub.s32 3, %v799
  %v801 = vrot.slane %v781, %v800
  %v802 = vlaneseq
  %v803 = vshrl.u32 %v802, 7
  %v804 = vsub.s32 3, %v803
  %v805 = vrot.slane %v785, %v804
  %vm806 = vcmp.gt.f32.partialorder %v728, 0.5
  %vm807 = vcmp.gt.f32.partialorder %v732, 0.5
  %v808 = vsel %vm806, %v757, %v793
  %v809 = vsel %vm806, %v761, %v797
  %v810 = vsel %vm806, %v765, %v801
  %v811 = vsel %vm806, %v769, %v805
  %v812 = vsel %vm807, %v757, %v793
  %v813 = vsel %vm807, %v761, %v797
  %v814 = vsel %vm807, %v765, %v801
  %v815 = vsel %vm807, %v769, %v805
  %v816 = vmul.f32 %v718, %v808
  %v817 = vmul.f32 %v719, %v809
  %v818 = vmul.f32 %v720, %v810
  %v819 = vmul.f32 %v721, %v811
  %v820 = vmul.f32 %v722, %v812
  %v821 = vmul.f32 %v723, %v813
  %v822 = vmul.f32 %v724, %v814
  %v823 = vmul.f32 %v725, %v815
  %v824 = vld [vmem:[%s2] sm:$0xff]
  %v825 = vld [vmem:[%s2 + $0x8] sm:$0xff]
  %vm826 = vcmask 130048
  %v828 = vsel %vm826, %v824, 0
  %v831 = vsel %vm826, %v825, 0
  %833 = vmatprep.subr.mxu0 0.0
  %834 = vmatpush1.msra.mxu0 0.0
  %835 = vmatprep.subr.mxu0 0.0
  %836 = vmatpush1.msra.mxu0 0.0
  %837 = vmatprep.subr.mxu0 0.0
  %838 = vmatpush1.msra.mxu0 0.0
  %839 = vmatprep.subr.mxu0 0.0
  %840 = vmatpush1.msra.mxu0 0.0
  %841 = vmatprep.subr.mxu0 0.0
  %842 = vmatpush1.msra.mxu0 0.0
  %843 = vmatprep.subr.mxu0 0.0
  %844 = vmatpush1.msra.mxu0 0.0
  %845 = vmatprep.subr.mxu0 0.0
  %846 = vmatpush1.msra.mxu0 0.0
  %847 = vmatprep.subr.mxu0 0.0
  %848 = vmatpush1.msra.mxu0 0.0
  %849 = vmatprep.subr.mxu0 0.0
  %850 = vmatpush1.msra.mxu0 0.0
  %851 = vmatprep.subr.mxu0 0.0
  %852 = vmatpush1.msra.mxu0 0.0
  %853 = vmatprep.subr.mxu0 0.0
  %854 = vmatpush1.msra.mxu0 0.0
  %855 = vmatprep.subr.mxu0 0.0
  %856 = vmatpush1.msra.mxu0 0.0
  %857 = vmatprep.subr.mxu0 0.0
  %858 = vmatpush1.msra.mxu0 0.0
  %859 = vmatprep.subr.mxu0 0.0
  %860 = vmatpush1.msra.mxu0 0.0
  %861 = vmatprep.subr.mxu0 %v821
  %862 = vmatpush1.msra.mxu0 %v820
  %863 = vmatprep.subr.mxu0 %v817
  %864 = vmatpush1.msra.mxu0 %v816
  %865 = vmatprep.subr.mxu0 0.0
  %866 = vmatpush2.msra.mxu0 0.0
  %867 = vmatprep.subr.mxu0 0.0
  %868 = vmatpush2.msra.mxu0 0.0
  %869 = vmatprep.subr.mxu0 0.0
  %870 = vmatpush2.msra.mxu0 0.0
  %871 = vmatprep.subr.mxu0 0.0
  %872 = vmatpush2.msra.mxu0 0.0
  %873 = vmatprep.subr.mxu0 0.0
  %874 = vmatpush2.msra.mxu0 0.0
  %875 = vmatprep.subr.mxu0 0.0
  %876 = vmatpush2.msra.mxu0 0.0
  %877 = vmatprep.subr.mxu0 0.0
  %878 = vmatpush2.msra.mxu0 0.0
  %879 = vmatprep.subr.mxu0 0.0
  %880 = vmatpush2.msra.mxu0 0.0
  %881 = vmatprep.subr.mxu0 0.0
  %882 = vmatpush2.msra.mxu0 0.0
  %883 = vmatprep.subr.mxu0 0.0
  %884 = vmatpush2.msra.mxu0 0.0
  %885 = vmatprep.subr.mxu0 0.0
  %886 = vmatpush2.msra.mxu0 0.0
  %887 = vmatprep.subr.mxu0 0.0
  %888 = vmatpush2.msra.mxu0 0.0
  %889 = vmatprep.subr.mxu0 0.0
  %890 = vmatpush2.msra.mxu0 0.0
  %891 = vmatprep.subr.mxu0 0.0
  %892 = vmatpush2.msra.mxu0 0.0
  %893 = vmatprep.subr.mxu0 0.0
  %894 = vmatpush2.msra.mxu0 0.0
  %895 = vmatprep.subr.mxu0 0.0
  %896 = vmatpush2.msra.mxu0 0.0
  %897 = vmatprep.mubr.f32.mxu0 0.0
  %898 = vmatmul.mubr.f32.gmra.mxu0 %v828
  %v899 = vpop.f32.mrf.mxu0
  %v900 = vadd.f32 0.0, %v899
  %v901 = vpop.f32.mrf.mxu0
  %v902 = vadd.f32 0.0, %v901
  %903 = vmatprep.mubr.f32.mxu0 0.0
  %904 = vmatmul.mubr.f32.gmra.mxu0 %v831
  %v905 = vpop.f32.mrf.mxu0
  %v906 = vadd.f32 0.0, %v905
  %v907 = vpop.f32.mrf.mxu0
  %v908 = vadd.f32 0.0, %v907
  %909 = vdwg.mxu0
  %910 = vmatprep.subr.mxu0 0.0
  %911 = vmatpush1.msra.mxu0 0.0
  %912 = vmatprep.subr.mxu0 0.0
  %913 = vmatpush1.msra.mxu0 0.0
  %914 = vmatprep.subr.mxu0 0.0
  %915 = vmatpush1.msra.mxu0 0.0
  %916 = vmatprep.subr.mxu0 0.0
  %917 = vmatpush1.msra.mxu0 0.0
  %918 = vmatprep.subr.mxu0 0.0
  %919 = vmatpush1.msra.mxu0 0.0
  %920 = vmatprep.subr.mxu0 0.0
  %921 = vmatpush1.msra.mxu0 0.0
  %922 = vmatprep.subr.mxu0 0.0
  %923 = vmatpush1.msra.mxu0 0.0
  %924 = vmatprep.subr.mxu0 0.0
  %925 = vmatpush1.msra.mxu0 0.0
  %926 = vmatprep.subr.mxu0 0.0
  %927 = vmatpush1.msra.mxu0 0.0
  %928 = vmatprep.subr.mxu0 0.0
  %929 = vmatpush1.msra.mxu0 0.0
  %930 = vmatprep.subr.mxu0 0.0
  %931 = vmatpush1.msra.mxu0 0.0
  %932 = vmatprep.subr.mxu0 0.0
  %933 = vmatpush1.msra.mxu0 0.0
  %934 = vmatprep.subr.mxu0 0.0
  %935 = vmatpush1.msra.mxu0 0.0
  %936 = vmatprep.subr.mxu0 0.0
  %937 = vmatpush1.msra.mxu0 0.0
  %938 = vmatprep.subr.mxu0 %v823
  %939 = vmatpush1.msra.mxu0 %v822
  %940 = vmatprep.subr.mxu0 %v819
  %941 = vmatpush1.msra.mxu0 %v818
  %942 = vmatprep.subr.mxu0 0.0
  %943 = vmatpush2.msra.mxu0 0.0
  %944 = vmatprep.subr.mxu0 0.0
  %945 = vmatpush2.msra.mxu0 0.0
  %946 = vmatprep.subr.mxu0 0.0
  %947 = vmatpush2.msra.mxu0 0.0
  %948 = vmatprep.subr.mxu0 0.0
  %949 = vmatpush2.msra.mxu0 0.0
  %950 = vmatprep.subr.mxu0 0.0
  %951 = vmatpush2.msra.mxu0 0.0
  %952 = vmatprep.subr.mxu0 0.0
  %953 = vmatpush2.msra.mxu0 0.0
  %954 = vmatprep.subr.mxu0 0.0
  %955 = vmatpush2.msra.mxu0 0.0
  %956 = vmatprep.subr.mxu0 0.0
  %957 = vmatpush2.msra.mxu0 0.0
  %958 = vmatprep.subr.mxu0 0.0
  %959 = vmatpush2.msra.mxu0 0.0
  %960 = vmatprep.subr.mxu0 0.0
  %961 = vmatpush2.msra.mxu0 0.0
  %962 = vmatprep.subr.mxu0 0.0
  %963 = vmatpush2.msra.mxu0 0.0
  %964 = vmatprep.subr.mxu0 0.0
  %965 = vmatpush2.msra.mxu0 0.0
  %966 = vmatprep.subr.mxu0 0.0
  %967 = vmatpush2.msra.mxu0 0.0
  %968 = vmatprep.subr.mxu0 0.0
  %969 = vmatpush2.msra.mxu0 0.0
  %970 = vmatprep.subr.mxu0 0.0
  %971 = vmatpush2.msra.mxu0 0.0
  %972 = vmatprep.subr.mxu0 0.0
  %973 = vmatpush2.msra.mxu0 0.0
  %974 = vmatprep.mubr.f32.mxu0 0.0
  %975 = vmatmul.mubr.f32.gmra.mxu0 %v828
  %v976 = vpop.f32.mrf.mxu0
  %v977 = vadd.f32 0.0, %v976
  %v978 = vpop.f32.mrf.mxu0
  %v979 = vadd.f32 0.0, %v978
  %980 = vmatprep.mubr.f32.mxu0 0.0
  %981 = vmatmul.mubr.f32.gmra.mxu0 %v831
  %v982 = vpop.f32.mrf.mxu0
  %v983 = vadd.f32 0.0, %v982
  %v984 = vpop.f32.mrf.mxu0
  %v985 = vadd.f32 0.0, %v984
  %986 = vdwg.mxu0
  %v987 = vmul.f32 %v816, %v900
  %v988 = vmul.f32 %v817, %v902
  %v989 = vmul.f32 %v818, %v977
  %v990 = vmul.f32 %v819, %v979
  %v991 = vmul.f32 %v820, %v906
  %v992 = vmul.f32 %v821, %v908
  %v993 = vmul.f32 %v822, %v983
  %v994 = vmul.f32 %v823, %v985
  %v995 = vadd.f32 %v987, %v991
  %v996 = vadd.f32 %v988, %v992
  %v997 = vadd.f32 %v989, %v993
  %v998 = vadd.f32 %v990, %v994
  %v1003 = vrot.slane %v995, 4
  %v1004 = vrot.slane %v996, 4
  %v1005 = vrot.slane %v997, 4
  %v1006 = vrot.slane %v998, 4
  %v1011 = vadd.f32 %v995, %v1003
  %v1012 = vadd.f32 %v996, %v1004
  %v1013 = vadd.f32 %v997, %v1005
  %v1014 = vadd.f32 %v998, %v1006
  %v1019 = vrot.slane %v1011, 2
  %v1020 = vrot.slane %v1012, 2
  %v1021 = vrot.slane %v1013, 2
  %v1022 = vrot.slane %v1014, 2
  %v1027 = vadd.f32 %v1011, %v1019
  %v1028 = vadd.f32 %v1012, %v1020
  %v1029 = vadd.f32 %v1013, %v1021
  %v1030 = vadd.f32 %v1014, %v1022
  %v1035 = vrot.slane %v1027, 1
  %v1036 = vrot.slane %v1028, 1
  %v1037 = vrot.slane %v1029, 1
  %v1038 = vrot.slane %v1030, 1
  %v1043 = vadd.f32 %v1027, %v1035
  %v1044 = vadd.f32 %v1028, %v1036
  %v1045 = vadd.f32 %v1029, %v1037
  %v1046 = vadd.f32 %v1030, %v1038
  %v1051 = vcombine.low %v1043, %v1044
  %v1052 = vcombine.low %v1045, %v1046
  %v1054 = vunpack.c.l.s4 1966171168
  %v1055 = vunpack.c.0.s8 %v1054
  %v1056 = vlaneseq
  %v1057 = vshrl.u32 %v1056, 7
  %v1058 = vsub.s32 %v1055, %v1057
  %v1059 = vrot.slane %v1051, %v1058
  %v1061 = vunpack.c.l.s4 1966171168
  %v1062 = vunpack.c.0.s8 %v1061
  %v1063 = vlaneseq
  %v1064 = vshrl.u32 %v1063, 7
  %v1065 = vsub.s32 %v1062, %v1064
  %v1066 = vrot.slane %v1052, %v1065
  %v1067 = vcombine.low %v1059, %v1066
  %v1069 = vunpack.c.l.s4 1966171168
  %v1070 = vunpack.c.0.s8 %v1069
  %v1071 = vlaneseq
  %v1072 = vshrl.u32 %v1071, 7
  %v1073 = vsub.s32 %v1070, %v1072
  %v1074 = vrot.slane %v1067, %v1073
  %v1076 = vlaneseq
  %vm1077 = vcmp.ge.s32.totalorder %v1076, 0
  %vm1078 = vcmp.lt.s32.totalorder %v1076, 512
  %vm1079 = vmand %vm1077, %vm1078
  %1080 = vst.msk [vmem:[%s3] sm:$0xf] %vm1079, %v1074
  // Predicated region
  $region14: #{angle_embedding_classifier.1} parent=0 // pred_check
    _
  $region15: #{angle_embedding_classifier.1} parent=0 // pred_check_branch
    %1082 = sbr.rel (0) target = $region17
  $region16: #{angle_embedding_classifier.1} parent=0 // pred_region
    _
  $region17: #{angle_embedding_classifier.1} parent=0 // pred_fallthru
    _
  // Predicated region
  $region18: #{angle_embedding_classifier.1} parent=0 // pred_check
    _
  $region19: #{angle_embedding_classifier.1} parent=0 // pred_check_branch
    %1084 = sbr.rel (0) target = $region21
  $region20: #{angle_embedding_classifier.1} parent=0 // pred_region
    _
  $region21: #{angle_embedding_classifier.1} parent=0 // pred_fallthru
    _

</llo_original>
